<compile_context>
chip_gen: v7x
topology: tpu7x:2x2x1
jax: 0.10.0
libtpu: 0.0.40
codegen_flags: <defaults>
</compile_context>

<pallas_src>
import math

import jax
import jax.numpy as jnp
from jax.experimental import pallas as pl
from jax.experimental.pallas import tpu as pltpu

_TARGET_SLAB_BYTES = 2 << 20      # ~2 MiB per-edge VMEM slab target
_MIN_GRID_STEPS = 4               # keep both v7x TensorCores streaming


def _gtconv_kernel(w_ref, a_ref, o_ref):
    # w_ref: (E,) f32 edge weights in SMEM (scalars).
    # a_ref: (E, BR, LANE) tile of A in VMEM (native dtype).
    # o_ref: (BR, LANE) output tile in VMEM (native dtype).
    E = a_ref.shape[0]
    acc = a_ref[0].astype(jnp.float32) * w_ref[0]
    for e in range(1, E):                       # E is tiny & static -> unrolled
        acc = acc + a_ref[e].astype(jnp.float32) * w_ref[e]
    o_ref[...] = acc.astype(o_ref.dtype)


def _choose_lane(P):
    """Lane width (multiple of 128) dividing P; prefer one that keeps the row
    count >= 8 (sublane-dense). None -> pure-JAX fallback."""
    for lane in (512, 256, 128):
        if P % lane == 0 and P // lane >= 8:
            return lane
    for lane in (512, 256, 128):
        if P % lane == 0:
            return lane
    return None


def _sublane_multiple(dtype):
    # Minimum second-minor tile: f32 -> 8, bf16 -> 16, int8/fp8 -> 32.
    return max(8, 32 // jnp.dtype(dtype).itemsize)


def _pick_block_rows(R, lane, elem_size, sub):
    if R < _MIN_GRID_STEPS * sub:
        return R                                # single full-extent block
    target = max(sub, (_TARGET_SLAB_BYTES // (lane * elem_size)) // sub * sub)
    cap = max(sub, (R // _MIN_GRID_STEPS) // sub * sub)   # >= 4 grid steps
    return min(target, cap)


def gtconv(A, weight):
    """A: (E, C, H, W); weight: (E, 1, 1, 1). Returns (C, H, W) in A.dtype."""
    E = A.shape[0]
    spatial = A.shape[1:]
    P = math.prod(spatial)

    # Parameter prep (tiny glue): softmax over dim=1 exactly like the module.
    w = jax.nn.softmax(weight.astype(jnp.float32), axis=1).reshape(-1)   # (E,)

    lane = _choose_lane(P)
    if lane is None:
        # Ragged / tiny spatial size: pure-JAX weighted sum (no copies, roofline).
        wb = w.reshape((E,) + (1,) * len(spatial))
        return jnp.sum(A * wb, axis=0).astype(A.dtype)

    R = P // lane
    A3 = A.reshape(E, R, lane)                  # free reshape (layout unchanged)

    elem = jnp.dtype(A.dtype).itemsize
    sub = _sublane_multiple(A.dtype)
    br = _pick_block_rows(R, lane, elem, sub)
    grid = (pl.cdiv(R, br),)

    cost = pl.CostEstimate(
        flops=2 * E * P,
        transcendentals=0,
        bytes_accessed=(E + 1) * P * elem + E * 4,
    )

    out = pl.pallas_call(
        _gtconv_kernel,
        out_shape=jax.ShapeDtypeStruct((R, lane), A.dtype),
        grid=grid,
        in_specs=[
            pl.BlockSpec(memory_space=pltpu.MemorySpace.SMEM),      # w: (E,) scalars
            pl.BlockSpec((E, br, lane), lambda i: (0, i, 0)),       # A tile
        ],
        out_specs=pl.BlockSpec((br, lane), lambda i: (i, 0)),
        compiler_params=pltpu.CompilerParams(
            dimension_semantics=("parallel",),
            vmem_limit_bytes=32 * 1024 * 1024,
        ),
        cost_estimate=cost,
    )(w, A3)

    return out.reshape(spatial)


if __name__ == "__main__":
    key = jax.random.PRNGKey(0)
    k_w, k_a = jax.random.split(key)

    # nn.Parameter(torch.Tensor(2,1,1,1)) with nn.init.normal_ -> std-normal.
    weight = jax.random.normal(k_w, (2, 1, 1, 1), dtype=jnp.float32)
    # Input A: edge-type-major NCHW stack, small shapes.
    A = jax.random.normal(k_a, (2, 4, 16, 16), dtype=jnp.float32)

    out = jax.block_until_ready(gtconv(A, weight))

    # Pure-JAX reference of the exact PyTorch forward.
    ref = jnp.sum(A * jax.nn.softmax(weight, axis=1), axis=0)

    assert out.shape == ref.shape == (4, 16, 16)
    assert jnp.allclose(out, ref, atol=1e-5, rtol=1e-5)
    print("KERNEL_OK")
</pallas_src>

<mosaic_0001>
module attributes {stable_mosaic.version = 11 : i64} {
  func.func @_gtconv_kernel(%arg0: i32, %arg1: memref<2xf32, #tpu.memory_space<smem>>, %arg2: memref<2x8x128xf32, #tpu.memory_space<vmem>>, %arg3: memref<8x128xf32, #tpu.memory_space<vmem>>) attributes {dimension_semantics = [#tpu.dimension_semantics<parallel>], iteration_bounds = array<i64: 1>, scalar_prefetch = 0 : i64, scratch_operands = 0 : i64, tpu.core_type = #tpu.core_type<tc>, window_params = [{transform_indices = @transform_0, window_bounds = array<i64: 2>}, {transform_indices = @transform_1, window_bounds = array<i64: 2, 8, 128>}, {transform_indices = @transform_2, window_bounds = array<i64: 8, 128>}]} {
    %c0 = arith.constant 0 : index
    %c0_0 = arith.constant 0 : index
    %c0_1 = arith.constant 0 : index
    %0 = vector.load %arg2[%c0, %c0_0, %c0_1] : memref<2x8x128xf32, #tpu.memory_space<vmem>>, vector<1x8x128xf32>
    %1 = vector.shape_cast %0 : vector<1x8x128xf32> to vector<8x128xf32>
    %c0_2 = arith.constant 0 : index
    %2 = memref.load %arg1[%c0_2] : memref<2xf32, #tpu.memory_space<smem>>
    %3 = vector.broadcast %2 : f32 to vector<8x128xf32>
    %4 = arith.mulf %1, %3 : vector<8x128xf32>
    %c1 = arith.constant 1 : index
    %c0_3 = arith.constant 0 : index
    %c0_4 = arith.constant 0 : index
    %5 = vector.load %arg2[%c1, %c0_3, %c0_4] : memref<2x8x128xf32, #tpu.memory_space<vmem>>, vector<1x8x128xf32>
    %6 = vector.shape_cast %5 : vector<1x8x128xf32> to vector<8x128xf32>
    %c1_5 = arith.constant 1 : index
    %7 = memref.load %arg1[%c1_5] : memref<2xf32, #tpu.memory_space<smem>>
    %8 = vector.broadcast %7 : f32 to vector<8x128xf32>
    %9 = arith.mulf %6, %8 : vector<8x128xf32>
    %10 = arith.addf %4, %9 : vector<8x128xf32>
    %c0_6 = arith.constant 0 : index
    %c0_7 = arith.constant 0 : index
    %11 = vector.load %arg3[%c0_6, %c0_7] : memref<8x128xf32, #tpu.memory_space<vmem>>, vector<8x128xf32>
    tpu.vector_store %arg3[%c0_6, %c0_7], %10 {strides = array<i32>} : memref<8x128xf32, #tpu.memory_space<vmem>>, vector<8x128xf32>,
    return
  }
  func.func @transform_0(%arg0: i32) -> i32 {
    %c0_i32 = arith.constant 0 : i32
    %c0_i32_0 = arith.constant 0 : i32
    return %c0_i32 : i32
  }
  func.func @transform_1(%arg0: i32) -> (i32, i32, i32) {
    %c0_i32 = arith.constant 0 : i32
    %c0_i32_0 = arith.constant 0 : i32
    %c0_i32_1 = arith.constant 0 : i32
    return %c0_i32, %arg0, %c0_i32_0 : i32, i32, i32
  }
  func.func @transform_2(%arg0: i32) -> (i32, i32) {
    %c0_i32 = arith.constant 0 : i32
    %c0_i32_0 = arith.constant 0 : i32
    return %arg0, %c0_i32 : i32, i32
  }
}

</mosaic_0001>

<llo_original>
// kernel: tpu_custom_call.1
$region0: #{tpu_custom_call.1}
  #allocation0 [shape = 'u32[]', space=smem, size = 0x4, offset = 0x4, fixed_abs, tag = 'smem constant byte address 0x4 - core index']
  #allocation1 [shape = 'u32[144,128]{1,0:T(1,128)}', space=vmem, size = 0x12000, scoped, tag = 'internal scratch']
  %s0 = inlined_call_operand.hbm [shape: f32[2], index: 0, kind: input, shape index: {}]
  %s1 = inlined_call_operand.hbm [shape: f32[2,8,128], index: 1, kind: input, shape index: {}]
  %s2 = inlined_call_operand.hbm [shape: f32[8,128], index: 2, kind: output, shape index: {}]
  %s3 = sld [smem:[#allocation0]]
  $region26: #{tpu_custom_call.1} parent=0
    _
  %s5 = ssub.s32 1, %s3
  %s6 = scalar_select 0, %s5, %s3
  $region1: #{tpu_custom_call.1} parent=0
    #allocation2 [shape = 'u8[512]{0}', space=smem, size = 0x200, scoped, tag = 'input window, operand 0, single buffered']
    #allocation3 [shape = 's32[1]{0}', space=sflag, size = 0x4, scoped, tag = 'scoped memory for tpu_custom_call.1']
    #allocation4 [shape = 's32[1]{0}', space=sflag, size = 0x4, scoped, tag = 'scoped memory for tpu_custom_call.1']
    #allocation5 [shape = 's32[1]{0}', space=sflag, size = 0x4, scoped, tag = 'scoped memory for tpu_custom_call.1']
    #allocation6 [shape = 'u8[8192]{0}', space=vmem, size = 0x2000, scoped, tag = 'input window, operand 1, single buffered']
    #allocation7 [shape = 'u8[4096]{0}', space=vmem, size = 0x1000, scoped, tag = 'output window, operand 0, single buffered']
    %7 = vsyncpa [#allocation5], 0
    %8 = vsyncpa [#allocation3], 0
    %9 = vsyncpa [#allocation4], 0
    // Predicated region
    $region2: #{tpu_custom_call.1} parent=1 // pred_check
      _
    $region3: #{tpu_custom_call.1} parent=1 // pred_check_branch
      %11 = sbr.rel (0) target = $region5
    $region4: #{tpu_custom_call.1} parent=1 // pred_region
      %s13 = ssub.s32 16, 16
      %14 = vsyncadd [#allocation5], %s13
      %17 = dma.hbm_to_smem %s0, 16, [#allocation2], [#allocation5]
    $region5: #{tpu_custom_call.1} parent=1 // pred_fallthru
      _
    // Predicated region
    $region6: #{tpu_custom_call.1} parent=1 // pred_check
      _
    $region7: #{tpu_custom_call.1} parent=1 // pred_check_branch
      %19 = sbr.rel (0) target = $region9
    $region8: #{tpu_custom_call.1} parent=1 // pred_region
      %s21 = ssub.s32 256, 256
      %22 = vsyncadd [#allocation3], %s21
      %s23 = sshll.u32 [#allocation6], 4
      %s24 = int_to_ptr.vmem [resolvable:$true] %s23
      %29 = dma.hbm_to_vmem [thread:$0]  %s1, 256, %s24, [#allocation3], 128, 128, 8
    $region9: #{tpu_custom_call.1} parent=1 // pred_fallthru
      _
    // Predicated region
    $region10: #{tpu_custom_call.1} parent=1 // pred_check
      _
    $region11: #{tpu_custom_call.1} parent=1 // pred_check_branch
      %31 = sbr.rel (0) target = $region13
    $region12: #{tpu_custom_call.1} parent=1 // pred_region
      %32 = dma.done [#allocation5], 16
    $region13: #{tpu_custom_call.1} parent=1 // pred_fallthru
      _
    // Predicated region
    $region14: #{tpu_custom_call.1} parent=1 // pred_check
      _
    $region15: #{tpu_custom_call.1} parent=1 // pred_check_branch
      %34 = sbr.rel (0) target = $region17
    $region16: #{tpu_custom_call.1} parent=1 // pred_region
      %35 = dma.done [#allocation3], 256
    $region17: #{tpu_custom_call.1} parent=1 // pred_fallthru
      _
    %36 = sfence
    %v37 = vld [vmem:[#allocation6] sm:$0xff]
    %s38 = sld [smem:[#allocation2]]
    %v39 = vstv %s38
    %v40 = vmul.f32 %v37, %v39
    %s41 = scalar_lea.vmem [#allocation6], 8
    %v42 = vld [vmem:[%s41] sm:$0xff]
    %s43 = sld [smem:[#allocation2 + $0x1]]
    %v44 = vstv %s43
    %v45 = vmul.f32 %v42, %v44
    %v46 = vadd.f32 %v40, %v45
    %47 = vst [vmem:[#allocation7] sm:$0xff] %v46
    // Predicated region
    $region18: #{tpu_custom_call.1} parent=1 // pred_check
      _
    $region19: #{tpu_custom_call.1} parent=1 // pred_check_branch
      %49 = sbr.rel (0) target = $region21
    $region20: #{tpu_custom_call.1} parent=1 // pred_region
      %s51 = ssub.s32 128, 128
      %52 = vsyncadd [#allocation4], %s51
      %s54 = sshll.u32 [#allocation7], 4
      %s55 = int_to_ptr.vmem [resolvable:$true] %s54
      %57 = dma.vmem_to_hbm [thread:$0]  %s55, 128, %s2, [#allocation4]
    $region21: #{tpu_custom_call.1} parent=1 // pred_fallthru
      _
    // Predicated region
    $region22: #{tpu_custom_call.1} parent=1 // pred_check
      _
    $region23: #{tpu_custom_call.1} parent=1 // pred_check_branch
      %59 = sbr.rel (0) target = $region25
    $region24: #{tpu_custom_call.1} parent=1 // pred_region
      %60 = dma.done [#allocation4], 128
    $region25: #{tpu_custom_call.1} parent=1 // pred_fallthru
      _
    %61 = vsyncpa [#allocation3], 1
    %62 = vsyncpa [#allocation4], 1
    %63 = vsyncpa [#allocation5], 1

</llo_original>
